<compile_context>
chip_gen: v5e
topology: v5e:2x2
jax: 0.10.0
libtpu: 0.0.40
codegen_flags: <defaults>
</compile_context>

<pallas_src>
import jax
import jax.numpy as jnp
import numpy as np
from jax.experimental import pallas as pl
from jax.experimental.pallas import tpu as pltpu


# ---------------------------------------------------------------------------
# Pallas kernel: pure DMA-engine HBM -> HBM copy (no VMEM staging, no grid).
# ---------------------------------------------------------------------------
def _hbm_copy_kernel(x_hbm_ref, o_hbm_ref, sem):
    cp = pltpu.make_async_copy(x_hbm_ref, o_hbm_ref, sem)
    cp.start()
    cp.wait()


def flatten_extractor_forward(observations, *, copy=False):
    """nn.Flatten() semantics: (B, *obs_shape) -> (B, prod(obs_shape)).

    The reshape is the PyTorch row-major flatten ordering (W fastest, then H,
    then C for NCHW) and is pure layout on a contiguous input. By default no
    Pallas kernel is launched (flatten is metadata-only). Pass ``copy=True``
    to force a fresh output buffer via a single direct HBM->HBM DMA.
    """
    B = observations.shape[0]
    x2d = observations.reshape(B, -1)  # row-major == nn.Flatten ordering

    if not copy:
        # Top optimization from the review: eliminate the data movement
        # entirely — the flatten is free.
        return x2d

    D = x2d.shape[1]
    itemsize = jnp.dtype(x2d.dtype).itemsize
    return pl.pallas_call(
        _hbm_copy_kernel,
        out_shape=jax.ShapeDtypeStruct((B, D), x2d.dtype),
        in_specs=[pl.BlockSpec(memory_space=pl.ANY)],
        out_specs=pl.BlockSpec(memory_space=pl.ANY),
        scratch_shapes=[pltpu.SemaphoreType.DMA(())],
        cost_estimate=pl.CostEstimate(
            flops=0, transcendentals=0,
            bytes_accessed=2 * B * D * itemsize),
    )(x2d)


# ---------------------------------------------------------------------------
# Pure numpy reference for correctness check
# ---------------------------------------------------------------------------
def reference_forward(observations):
    return np.asarray(observations).reshape(observations.shape[0], -1)


# ---------------------------------------------------------------------------
if __name__ == "__main__":
    key = jax.random.PRNGKey(0)
    k1, k2 = jax.random.split(key)

    # Small image-like observation: batch=2, channels=4, spatial=16x16
    B, C, H, W = 2, 4, 16, 16
    obs_img = jax.random.uniform(k1, (B, C, H, W), jnp.float32)

    # Default (zero-copy, metadata-only) path.
    out = jax.block_until_ready(flatten_extractor_forward(obs_img))
    assert out.shape == (B, C * H * W), out.shape
    np.testing.assert_allclose(np.asarray(out), reference_forward(obs_img),
                               rtol=0.0, atol=0.0)

    # Explicit-copy path: exercises the HBM->HBM DMA Pallas kernel on TPU.
    out_c = jax.block_until_ready(flatten_extractor_forward(obs_img, copy=True))
    assert out_c.shape == (B, C * H * W), out_c.shape
    np.testing.assert_allclose(np.asarray(out_c), reference_forward(obs_img),
                               rtol=0.0, atol=0.0)

    # Already-low-rank observation (vector obs), batch=8, dim=32 — D % 128 != 0
    # is a non-issue for the DMA copy (no masked vst, no lane padding).
    obs_vec = jax.random.normal(k2, (8, 32), jnp.float32)
    out_v = jax.block_until_ready(flatten_extractor_forward(obs_vec, copy=True))
    assert out_v.shape == (8, 32), out_v.shape
    np.testing.assert_allclose(np.asarray(out_v), reference_forward(obs_vec),
                               rtol=0.0, atol=0.0)

    print("KERNEL_OK")
</pallas_src>

<mosaic_0001>
module attributes {stable_mosaic.version = 11 : i64} {
  func.func @_hbm_copy_kernel(%arg0: memref<2x1024xf32, #tpu.memory_space<any>>, %arg1: memref<2x1024xf32, #tpu.memory_space<any>>, %arg2: memref<!tpu.dma_semaphore, #tpu.memory_space<semaphore_mem>>) attributes {dimension_semantics = [], scalar_prefetch = 0 : i64, scratch_operands = 1 : i64, tpu.core_type = #tpu.core_type<tc>} {
    tpu.enqueue_dma source(%arg0 : memref<2x1024xf32, #tpu.memory_space<any>>) target(%arg1 : memref<2x1024xf32, #tpu.memory_space<any>>) target_semaphore(%arg2 : memref<!tpu.dma_semaphore, #tpu.memory_space<semaphore_mem>>)
    tpu.wait_dma2 semaphore(%arg2 : memref<!tpu.dma_semaphore, #tpu.memory_space<semaphore_mem>>) src(%arg0 : memref<2x1024xf32, #tpu.memory_space<any>>) dst(%arg1 : memref<2x1024xf32, #tpu.memory_space<any>>)
    return
  }
}

</mosaic_0001>

<llo_original>
// kernel: tpu_custom_call.1
$region0: #{tpu_custom_call.1}
  #allocation0 [shape = 'u32[]', space=smem, size = 0x4, offset = 0x4, fixed_abs, tag = 'smem constant byte address 0x4 - core index']
  #allocation1 [shape = 'u32[72,128]{1,0:T(1,128)}', space=vmem, size = 0x9000, scoped, tag = 'internal scratch']
  #allocation2 [shape = 's32[1]{0}', space=sflag, size = 0x4, scoped, tag = 'scratch operand']
  #allocation3 [shape = 's32[]', space=sflag, size = 0x4, offset = 0, fixed_abs, tag = 'sflag constant byte address 0x0 - dummy sync flag']
  #allocation4 [shape = 'u32[0]{0}', space=smem, size = 0, offset = 0, fixed_abs, tag = 'smem constant byte address 0x0 - null']
  %s0 = inlined_call_operand.hbm [shape: f32[2,1024], index: 0, kind: input, shape index: {}]
  %s1 = inlined_call_operand.hbm [shape: f32[2,1024], index: 1, kind: output, shape index: {}]
  %s2 = sld [smem:[#allocation0]]
  $region2: #{tpu_custom_call.1} parent=0
    _
  %s4 = ssub.s32 1, %s2
  %s5 = scalar_select 0, %s4, %s2
  %s7 = sshll.u32 1, 14
  %s8 = sxor.u32 4294967295, %s7
  %s10 = sshll.u32 %s0, 4
  %s11 = int_to_ptr.hbm [resolvable:$true] %s10
  %s12 = sshll.u32 %s1, 4
  %s13 = int_to_ptr.hbm [resolvable:$true] %s12
  %16 = dma.general %s11, 256, %s13, [#allocation2], [#allocation3], [#allocation4], 0, 0
  %s17 = smul.u32 2, 1
  %s18 = smul.u32 %s17, 8
  %s19 = sshll.u32 %s18, 4
  %20 = dma.done [#allocation2], %s19
  %21 = vsyncmov [#allocation2]
  %s22 = vpop.sfrf %21
  %p23 = scmp.eq.s32.totalorder %s22, 0
  %p24 = pneg %p23
  %26 = shalt.err (%p24)

</llo_original>
